<compile_context>
chip_gen: v5e
topology: v5e:2x2
jax: 0.10.0
libtpu: 0.0.40
codegen_flags: <defaults>
</compile_context>

<pallas_src>
import functools

import jax
import jax.numpy as jnp
from jax.experimental import pallas as pl
from jax.experimental.pallas import tpu as pltpu


def _layernorm_kernel(x_ref, g_ref, b_ref, o_ref, *, eps, feat_valid):
    """Row-wise LayerNorm over the lane axis.

    x_ref : (tile_rows, Fp) input tile; Fp may include zero-padded lanes.
    g_ref, b_ref : (1, Fp) f32 scale / shift, resident blocks (constant index map).
    feat_valid : number of real (unpadded) features — statistics use only these.
    """
    x = x_ref[...].astype(jnp.float32)
    feat_pad = x.shape[-1]

    # Padded lanes hold zeros, so the plain lane sum equals the sum over the
    # valid features; only the variance needs an explicit lane mask.
    mean = jnp.sum(x, axis=-1, keepdims=True) * (1.0 / feat_valid)
    centered = x - mean
    sq = centered * centered
    if feat_valid != feat_pad:  # static (trace-time) branch
        col = jax.lax.broadcasted_iota(jnp.int32, (1, feat_pad), 1)
        sq = jnp.where(col < feat_valid, sq, 0.0)

    # torch.std default is the unbiased (N-1) estimator.
    # NOTE: feat_valid == 1 yields inf/nan, matching torch.std on one element.
    var_unbiased = jnp.sum(sq, axis=-1, keepdims=True) / (feat_valid - 1)
    std = jnp.sqrt(var_unbiased)

    # eps is added to std AFTER sqrt (module semantics; NOT nn.LayerNorm).
    # Exact f32 divide on the (tile_rows, 1) column: a handful of vregs, so it
    # is invisible against HBM traffic and carries no precision risk.
    inv = 1.0 / (std + eps)

    o_ref[...] = (g_ref[...] * (centered * inv) + b_ref[...]).astype(o_ref.dtype)


def _vmem_capacity_bytes():
    try:
        return int(pltpu.get_tpu_info().vmem_capacity_bytes)
    except Exception:
        # Conservative fallback (v7x per-TensorCore physical VMEM).
        return 64 * 1024 * 1024


def _sublane_multiple(dtype):
    # Sub-32-bit dtypes pack along sublanes: 8 rows (f32), 16 (bf16), 32 (int8/fp8).
    return 8 * max(1, 4 // int(jnp.dtype(dtype).itemsize))


def _choose_tile_rows(rows, feat_pad, x_dtype, out_dtype, vmem_cap):
    """Largest sensible row tile.

    Policy: dtype-aware sublane rounding; ~0.7 of VMEM for double-buffered
    in/out tiles + live f32 temps; hard cap at 1024 rows; keep >= ~4 grid
    steps so the pipeline overlaps and multi-TC parts can split the axis.
    """
    sub = _sublane_multiple(x_dtype)
    if rows <= sub:
        return rows                      # full-dim block is always legal

    in_b = int(jnp.dtype(x_dtype).itemsize)
    out_b = int(jnp.dtype(out_dtype).itemsize)
    # Double-buffered pipeline tiles + live f32 temps (x upcast + centered).
    per_row = feat_pad * (2 * in_b + 2 * out_b + 2 * 4)
    tr = int(vmem_cap * 0.7) // per_row
    tr = min(tr, 1024)                   # >512 adds nothing but VMEM pressure

    # Never collapse to grid=(1,); target >= ~4 steps when the array allows it.
    cdiv4 = (rows + 3) // 4
    cap_steps = ((cdiv4 + sub - 1) // sub) * sub
    tr = min(tr, cap_steps)

    tr = max(sub, (tr // sub) * sub)     # sublane-aligned, never below the floor
    return min(tr, rows)


def _vmem_limit_bytes(tr, feat_pad, x_dtype, out_dtype, vmem_cap):
    in_b = int(jnp.dtype(x_dtype).itemsize)
    out_b = int(jnp.dtype(out_dtype).itemsize)
    tiles = tr * feat_pad * (2 * in_b + 2 * out_b)   # double-buffered in/out tiles
    temps = tr * feat_pad * 4 * 3                    # f32 working-set headroom
    params = 2 * (2 * feat_pad * 4)                  # gamma/beta (tiny)
    need = tiles + temps + params + (2 << 20)        # + compiler scratch slack
    return int(min(vmem_cap, max(need, 4 << 20)))


def layer_norm(x, a2, b2, eps=1e-6):
    """LayerNorm over the last axis, matching the PyTorch module exactly.

    x:  (..., F)
    a2: (F,)  scale
    b2: (F,)  shift
    """
    orig_shape = x.shape
    feat = int(orig_shape[-1])
    rows = 1
    for d in orig_shape[:-1]:
        rows *= int(d)

    x2 = x.reshape(rows, feat)

    # Guarantee a lane-dense (multiple-of-128) last dim so output stores are
    # unmasked full-width `vst` (biggest single lever on mem-bound kernels).
    # Statistics inside the kernel only use the `feat` real columns.
    feat_pad = ((feat + 127) // 128) * 128
    g2 = a2.reshape(1, feat).astype(jnp.float32)
    b2_ = b2.reshape(1, feat).astype(jnp.float32)
    if feat_pad != feat:
        pad = feat_pad - feat
        x2 = jnp.pad(x2, ((0, 0), (0, pad)))
        g2 = jnp.pad(g2, ((0, 0), (0, pad)))
        b2_ = jnp.pad(b2_, ((0, 0), (0, pad)))

    vmem_cap = _vmem_capacity_bytes()
    tr = _choose_tile_rows(rows, feat_pad, x.dtype, x.dtype, vmem_cap)
    grid = (pl.cdiv(rows, tr),)

    kernel = functools.partial(_layernorm_kernel, eps=eps, feat_valid=feat)

    out = pl.pallas_call(
        kernel,
        out_shape=jax.ShapeDtypeStruct((rows, feat_pad), x.dtype),
        grid_spec=pltpu.PrefetchScalarGridSpec(
            num_scalar_prefetch=0,
            grid=grid,
            in_specs=[
                pl.BlockSpec((tr, feat_pad), lambda i: (i, 0)),
                pl.BlockSpec((1, feat_pad), lambda i: (0, 0)),
                pl.BlockSpec((1, feat_pad), lambda i: (0, 0)),
            ],
            out_specs=pl.BlockSpec((tr, feat_pad), lambda i: (i, 0)),
        ),
        compiler_params=pltpu.CompilerParams(
            # PARALLEL: megacore-shards the row axis on multi-TC parts; no-op
            # on single-core v5e/v6e.
            dimension_semantics=(pltpu.PARALLEL,),
            vmem_limit_bytes=_vmem_limit_bytes(tr, feat_pad, x.dtype, x.dtype,
                                               vmem_cap),
        ),
    )(x2, g2, b2_)

    if feat_pad != feat:
        out = out[:, :feat]
    return out.reshape(orig_shape)


def _reference(x, a2, b2, eps=1e-6):
    x32 = x.astype(jnp.float32)
    mean = jnp.mean(x32, axis=-1, keepdims=True)
    std = jnp.std(x32, axis=-1, keepdims=True, ddof=1)  # unbiased, like torch.std
    return (a2 * (x32 - mean) / (std + eps) + b2).astype(x.dtype)


if __name__ == "__main__":
    key = jax.random.PRNGKey(0)
    k1, k2 = jax.random.split(key)
    eps = 1e-6

    # Case 1: lane-aligned hidden size (production-like fast path, no padding).
    b1, s1, h1 = 2, 16, 128
    x1 = jax.random.normal(k1, (b1, s1, h1), dtype=jnp.float32)
    a2_1 = jnp.ones((h1,), dtype=jnp.float32)   # nn.Parameter(torch.ones)
    b2_1 = jnp.zeros((h1,), dtype=jnp.float32)  # nn.Parameter(torch.zeros)
    out1 = jax.block_until_ready(layer_norm(x1, a2_1, b2_1, eps))
    ref1 = _reference(x1, a2_1, b2_1, eps)
    assert out1.shape == x1.shape
    assert jnp.allclose(out1, ref1, atol=1e-5, rtol=1e-5), "aligned-path mismatch"

    # Case 2: small unaligned hidden (exercises the padded / masked-stats path).
    b2s, s2, h2 = 2, 8, 32
    x2 = jax.random.normal(k2, (b2s, s2, h2), dtype=jnp.float32)
    a2_2 = jnp.ones((h2,), dtype=jnp.float32)
    b2_2 = jnp.zeros((h2,), dtype=jnp.float32)
    out2 = jax.block_until_ready(layer_norm(x2, a2_2, b2_2, eps))
    ref2 = _reference(x2, a2_2, b2_2, eps)
    assert out2.shape == x2.shape
    assert jnp.allclose(out2, ref2, atol=1e-5, rtol=1e-5), "padded-path mismatch"

    print("KERNEL_OK")
</pallas_src>

<mosaic_0001>
module attributes {stable_mosaic.version = 11 : i64} {
  func.func @_layernorm_kernel(%arg0: i32, %arg1: memref<8x128xf32, #tpu.memory_space<vmem>>, %arg2: memref<1x128xf32, #tpu.memory_space<vmem>>, %arg3: memref<1x128xf32, #tpu.memory_space<vmem>>, %arg4: memref<8x128xf32, #tpu.memory_space<vmem>>) attributes {dimension_semantics = [#tpu.dimension_semantics<parallel>], iteration_bounds = array<i64: 4>, scalar_prefetch = 0 : i64, scratch_operands = 0 : i64, tpu.core_type = #tpu.core_type<tc>, window_params = [{transform_indices = @transform_0, window_bounds = array<i64: 8, 128>}, {pipeline_mode = #tpu.pipeline_mode<synchronous>, transform_indices = @transform_1, window_bounds = array<i64: 1, 128>}, {pipeline_mode = #tpu.pipeline_mode<synchronous>, transform_indices = @transform_2, window_bounds = array<i64: 1, 128>}, {transform_indices = @transform_3, window_bounds = array<i64: 8, 128>}]} {
    %c0 = arith.constant 0 : index
    %c0_0 = arith.constant 0 : index
    %0 = vector.load %arg1[%c0, %c0_0] : memref<8x128xf32, #tpu.memory_space<vmem>>, vector<8x128xf32>
    %cst = arith.constant dense<0.000000e+00> : vector<8xf32>
    %1 = vector.multi_reduction <add>, %0, %cst [1] : vector<8x128xf32> to vector<8xf32>
    %2 = vector.shape_cast %1 : vector<8xf32> to vector<8x1xf32>
    %cst_1 = arith.constant 7.812500e-03 : f32
    %3 = vector.broadcast %cst_1 : f32 to vector<8x1xf32>
    %4 = arith.mulf %2, %3 : vector<8x1xf32>
    %5 = vector.broadcast %4 : vector<8x1xf32> to vector<8x128xf32>
    %6 = arith.subf %0, %5 : vector<8x128xf32>
    %7 = arith.mulf %6, %6 : vector<8x128xf32>
    %cst_2 = arith.constant dense<0.000000e+00> : vector<8xf32>
    %8 = vector.multi_reduction <add>, %7, %cst_2 [1] : vector<8x128xf32> to vector<8xf32>
    %9 = vector.shape_cast %8 : vector<8xf32> to vector<8x1xf32>
    %cst_3 = arith.constant 1.270000e+02 : f32
    %10 = vector.broadcast %cst_3 : f32 to vector<8x1xf32>
    %11 = arith.divf %9, %10 : vector<8x1xf32>
    %12 = math.sqrt %11 : vector<8x1xf32>
    %cst_4 = arith.constant 9.99999997E-7 : f32
    %13 = vector.broadcast %cst_4 : f32 to vector<8x1xf32>
    %14 = arith.addf %12, %13 : vector<8x1xf32>
    %cst_5 = arith.constant 1.000000e+00 : f32
    %15 = vector.broadcast %cst_5 : f32 to vector<8x1xf32>
    %16 = arith.divf %15, %14 : vector<8x1xf32>
    %c0_6 = arith.constant 0 : index
    %c0_7 = arith.constant 0 : index
    %17 = vector.load %arg2[%c0_6, %c0_7] : memref<1x128xf32, #tpu.memory_space<vmem>>, vector<1x128xf32>
    %18 = vector.broadcast %16 : vector<8x1xf32> to vector<8x128xf32>
    %19 = arith.mulf %6, %18 : vector<8x128xf32>
    %20 = vector.broadcast %17 : vector<1x128xf32> to vector<8x128xf32>
    %21 = arith.mulf %20, %19 : vector<8x128xf32>
    %c0_8 = arith.constant 0 : index
    %c0_9 = arith.constant 0 : index
    %22 = vector.load %arg3[%c0_8, %c0_9] : memref<1x128xf32, #tpu.memory_space<vmem>>, vector<1x128xf32>
    %23 = vector.broadcast %22 : vector<1x128xf32> to vector<8x128xf32>
    %24 = arith.addf %21, %23 : vector<8x128xf32>
    %c0_10 = arith.constant 0 : index
    %c0_11 = arith.constant 0 : index
    %25 = vector.load %arg4[%c0_10, %c0_11] : memref<8x128xf32, #tpu.memory_space<vmem>>, vector<8x128xf32>
    tpu.vector_store %arg4[%c0_10, %c0_11], %24 {strides = array<i32>} : memref<8x128xf32, #tpu.memory_space<vmem>>, vector<8x128xf32>,
    return
  }
  func.func @transform_0(%arg0: i32) -> (i32, i32) {
    %c0_i32 = arith.constant 0 : i32
    %c0_i32_0 = arith.constant 0 : i32
    return %arg0, %c0_i32 : i32, i32
  }
  func.func @transform_1(%arg0: i32) -> (i32, i32) {
    %c0_i32 = arith.constant 0 : i32
    %c0_i32_0 = arith.constant 0 : i32
    %c0_i32_1 = arith.constant 0 : i32
    return %c0_i32, %c0_i32_0 : i32, i32
  }
  func.func @transform_2(%arg0: i32) -> (i32, i32) {
    %c0_i32 = arith.constant 0 : i32
    %c0_i32_0 = arith.constant 0 : i32
    %c0_i32_1 = arith.constant 0 : i32
    return %c0_i32, %c0_i32_0 : i32, i32
  }
  func.func @transform_3(%arg0: i32) -> (i32, i32) {
    %c0_i32 = arith.constant 0 : i32
    %c0_i32_0 = arith.constant 0 : i32
    return %arg0, %c0_i32 : i32, i32
  }
}

</mosaic_0001>

<llo_original>
// kernel: tpu_custom_call.1
$region0: #{tpu_custom_call.1}
  #allocation0 [shape = 'u32[]', space=smem, size = 0x4, offset = 0x4, fixed_abs, tag = 'smem constant byte address 0x4 - core index']
  #allocation1 [shape = 'u32[72,128]{1,0:T(1,128)}', space=vmem, size = 0x9000, scoped, tag = 'internal scratch']
  %s0 = inlined_call_operand.hbm [shape: f32[32,128], index: 0, kind: input, shape index: {}]
  %s1 = inlined_call_operand.hbm [shape: f32[1,128], index: 1, kind: input, shape index: {}]
  %s2 = inlined_call_operand.vmem [shape: f32[1,128], index: 2, kind: input, shape index: {}]
  %s3 = inlined_call_operand.hbm [shape: f32[32,128], index: 3, kind: output, shape index: {}]
  %s4 = sld [smem:[#allocation0]]
  $region53: #{tpu_custom_call.1} parent=0
    _
  %s6 = ssub.s32 1, %s4
  %s7 = scalar_select 0, %s6, %s4
  $region1: #{tpu_custom_call.1} parent=0
    #allocation2 [shape = 'u8[8192]{0}', space=vmem, size = 0x2000, scoped, tag = 'input window, operand 0']
    #allocation3 [shape = 's32[2]{0}', space=sflag, size = 0x8, scoped, tag = 'scoped memory for tpu_custom_call.1']
    #allocation4 [shape = 's32[2]{0}', space=sflag, size = 0x8, scoped, tag = 'scoped memory for tpu_custom_call.1']
    #allocation5 [shape = 'u8[512]{0}', space=vmem, size = 0x400, scoped, tag = 'input window, operand 1, single buffered']
    #allocation6 [shape = 's32[1]{0}', space=sflag, size = 0x4, scoped, tag = 'scoped memory for tpu_custom_call.1']
    #allocation7 [shape = 'u8[8192]{0}', space=vmem, size = 0x2000, scoped, tag = 'output window, operand 0']
    %8 = vsyncpa [#allocation3], 0
    %s9 = scalar_lea.sflag [#allocation3], 1
    %10 = vsyncpa %s9, 0
    %11 = vsyncpa [#allocation6], 0
    %12 = vsyncpa [#allocation4], 0
    %s13 = scalar_lea.sflag [#allocation4], 1
    %14 = vsyncpa %s13, 0
    loop: start=0, step=1, limit=6
    $region2: #{tpu_custom_call.1} parent=1 // loop_pre_header
      _
    $region3: #{tpu_custom_call.1} parent=1 // loop_header
      %s16 = sphi 0, %s20
      %p17 = scmp.ge.s32.totalorder %s16, 6
      %s26 = sphi 0, %s28
      %s29 = sphi 0, %s26
      %s30 = sphi 0, %s29
      %s46 = sphi 0, %s30
      %s50 = sphi 0, %s50
      %s52 = sphi 0, %s50
      %s53 = sphi 0, %s52
      %s67 = sphi 0, %s53
      %s71 = sphi 0, %s71
      %s73 = sphi 0, %s71
      %s74 = sphi 0, %s73
      %s88 = sphi 0, %s74
      %s94 = sphi 0, %s96
      %s97 = sphi 0, %s94
      %s98 = sphi 0, %s97
      %s114 = sphi 0, %s98
    $region4: #{tpu_custom_call.1} parent=1 // loop_header_branch
      %19 = sbr.rel (%p17) target = $region8
    $region5: #{tpu_custom_call.1} parent=1 // loop_body
      %s21 = ssub.s32 %s16, 1
      %s22 = ssub.s32 %s16, 2
      %s23 = sadd.s32 %s16, 1
      %s24 = ssub.s32 %s16, %s23
      %p25 = scmp.eq.s32.totalorder %s24, 0
      %s27 = sadd.s32 %s26, 1
      %s28 = scalar_select %p25, %s26, %s27
      %p31 = pneg %p25
      %p32 = scmp.eq.s32.totalorder %s16, 3
      %p33 = por %p31, %p32
      %p34 = scmp.ne.s32.totalorder %s26, %s29
      %p35 = scmp.eq.s32.totalorder %s16, 0
      %p36 = por %p34, %p35
      %p37 = scmp.ne.s32.totalorder %s26, %s29
      %p38 = scmp.eq.s32.totalorder %s21, 3
      %p39 = por %p37, %p38
      %p40 = scmp.ne.s32.totalorder %s29, %s30
      %p41 = scmp.eq.s32.totalorder %s21, 0
      %p42 = por %p40, %p41
      %p43 = scmp.ne.s32.totalorder %s29, %s30
      %p44 = scmp.eq.s32.totalorder %s22, 3
      %p45 = por %p43, %p44
      %p47 = scmp.ne.s32.totalorder %s30, %s46
      %p48 = scmp.eq.s32.totalorder %s22, 0
      %p49 = por %p47, %p48
      %s51 = sadd.s32 %s50, 1
      %p54 = scmp.eq.s32.totalorder %s16, 3
      %p55 = scmp.ne.s32.totalorder %s50, %s52
      %p56 = scmp.eq.s32.totalorder %s16, 0
      %p57 = por %p55, %p56
      %p58 = scmp.ne.s32.totalorder %s50, %s52
      %p59 = scmp.eq.s32.totalorder %s21, 3
      %p60 = por %p58, %p59
      %p61 = scmp.ne.s32.totalorder %s52, %s53
      %p62 = scmp.eq.s32.totalorder %s21, 0
      %p63 = por %p61, %p62
      %p64 = scmp.ne.s32.totalorder %s52, %s53
      %p65 = scmp.eq.s32.totalorder %s22, 3
      %p66 = por %p64, %p65
      %p68 = scmp.ne.s32.totalorder %s53, %s67
      %p69 = scmp.eq.s32.totalorder %s22, 0
      %p70 = por %p68, %p69
      %s72 = sadd.s32 %s71, 1
      %p75 = scmp.eq.s32.totalorder %s16, 3
      %p76 = scmp.ne.s32.totalorder %s71, %s73
      %p77 = scmp.eq.s32.totalorder %s16, 0
      %p78 = por %p76, %p77
      %p79 = scmp.ne.s32.totalorder %s71, %s73
      %p80 = scmp.eq.s32.totalorder %s21, 3
      %p81 = por %p79, %p80
      %p82 = scmp.ne.s32.totalorder %s73, %s74
      %p83 = scmp.eq.s32.totalorder %s21, 0
      %p84 = por %p82, %p83
      %p85 = scmp.ne.s32.totalorder %s73, %s74
      %p86 = scmp.eq.s32.totalorder %s22, 3
      %p87 = por %p85, %p86
      %p89 = scmp.ne.s32.totalorder %s74, %s88
      %p90 = scmp.eq.s32.totalorder %s22, 0
      %p91 = por %p89, %p90
      %s92 = ssub.s32 %s16, %s23
      %p93 = scmp.eq.s32.totalorder %s92, 0
      %s95 = sadd.s32 %s94, 1
      %s96 = scalar_select %p93, %s94, %s95
      %p99 = pneg %p93
      %p100 = scmp.eq.s32.totalorder %s16, 3
      %p101 = por %p99, %p100
      %p102 = scmp.ne.s32.totalorder %s94, %s97
      %p103 = scmp.eq.s32.totalorder %s16, 0
      %p104 = por %p102, %p103
      %p105 = scmp.ne.s32.totalorder %s94, %s97
      %p106 = scmp.eq.s32.totalorder %s21, 3
      %p107 = por %p105, %p106
      %p108 = scmp.ne.s32.totalorder %s97, %s98
      %p109 = scmp.eq.s32.totalorder %s21, 0
      %p110 = por %p108, %p109
      %p111 = scmp.ne.s32.totalorder %s97, %s98
      %p112 = scmp.eq.s32.totalorder %s22, 3
      %p113 = por %p111, %p112
      %p115 = scmp.ne.s32.totalorder %s98, %s114
      %p116 = scmp.eq.s32.totalorder %s22, 0
      %p117 = por %p115, %p116
      %p118 = scmp.le.s32.totalorder 1, %s16
      %p119 = scmp.lt.s32.totalorder %s16, 5
      %p120 = pnand %p118, %p119
      %p121 = pneg %p120
      // Predicated region
      $region9: #{tpu_custom_call.1} parent=5 // pred_check
        _
      $region10: #{tpu_custom_call.1} parent=5 // pred_check_branch
        %123 = sbr.rel (%p120) target = $region12
      $region11: #{tpu_custom_call.1} parent=5 // pred_region
        %s124 = ssub.s32 %s16, 1
        // Predicated region
        $region13: #{tpu_custom_call.1} parent=11 // pred_check
          %p125 = pneg %p63
        $region14: #{tpu_custom_call.1} parent=11 // pred_check_branch
          %127 = sbr.rel (%p125) target = $region16
        $region15: #{tpu_custom_call.1} parent=11 // pred_region
          %129 = vsyncadd [#allocation6], 0
          %s131 = sshll.u32 %s1, 4
          %s132 = int_to_ptr.hbm [resolvable:$true] %s131
          %s133 = sshll.u32 [#allocation5], 4
          %s134 = int_to_ptr.vmem [resolvable:$true] %s133
          %136 = dma.hbm_to_vmem [thread:$0]  %s132, 16, %s134, [#allocation6]
        $region16: #{tpu_custom_call.1} parent=11 // pred_fallthru
          _
        // Predicated region
        $region17: #{tpu_custom_call.1} parent=11 // pred_check
          %p137 = pneg %p84
        $region18: #{tpu_custom_call.1} parent=11 // pred_check_branch
          %139 = sbr.rel (%p137) target = $region20
        $region19: #{tpu_custom_call.1} parent=11 // pred_region
          _
        $region20: #{tpu_custom_call.1} parent=11 // pred_fallthru
          _
      $region12: #{tpu_custom_call.1} parent=5 // pred_fallthru
        _
      %p140 = scmp.lt.s32.totalorder %s16, 4
      // Predicated region
      $region21: #{tpu_custom_call.1} parent=5 // pred_check
        %p141 = pneg %p140
      $region22: #{tpu_custom_call.1} parent=5 // pred_check_branch
        %143 = sbr.rel (%p141) target = $region24
      $region23: #{tpu_custom_call.1} parent=5 // pred_region
        // Predicated region
        $region25: #{tpu_custom_call.1} parent=23 // pred_check
          %p144 = pneg %p36
        $region26: #{tpu_custom_call.1} parent=23 // pred_check_branch
          %146 = sbr.rel (%p144) target = $region28
        $region27: #{tpu_custom_call.1} parent=23 // pred_region
          %s147 = sand.u32 %s26, 1
          %s148 = scalar_lea.sflag [#allocation3], %s147
          %s149 = sand.u32 %s26, 1
          %s150 = smul.addr %s149, 8
          %s151 = scalar_lea.vmem [#allocation2], %s150
          %153 = vsyncadd %s148, 0
          %s154 = smul.addr %s16, 8
          %s155 = scalar_lea.hbm %s0, %s154
          %s157 = sshll.u32 %s155, 4
          %s158 = int_to_ptr.hbm [resolvable:$true] %s157
          %s159 = sshll.u32 %s151, 4
          %s160 = int_to_ptr.vmem [resolvable:$true] %s159
          %162 = dma.hbm_to_vmem [thread:$0]  %s158, 128, %s160, %s148
        $region28: #{tpu_custom_call.1} parent=23 // pred_fallthru
          _
      $region24: #{tpu_custom_call.1} parent=5 // pred_fallthru
        _
      %p163 = scmp.le.s32.totalorder 1, %s16
      %p164 = scmp.lt.s32.totalorder %s16, 5
      %p165 = pnand %p163, %p164
      %p166 = pneg %p165
      // Predicated region
      $region29: #{tpu_custom_call.1} parent=5 // pred_check
        _
      $region30: #{tpu_custom_call.1} parent=5 // pred_check_branch
        %168 = sbr.rel (%p165) target = $region32
      $region31: #{tpu_custom_call.1} parent=5 // pred_region
        %s169 = ssub.s32 %s16, 1
        %s170 = sand.u32 %s29, 1
        %s171 = scalar_lea.sflag [#allocation3], %s170
        %s172 = sand.u32 %s29, 1
        %s173 = smul.addr %s172, 8
        %s174 = scalar_lea.vmem [#allocation2], %s173
        // Predicated region
        $region33: #{tpu_custom_call.1} parent=31 // pred_check
          %p175 = pneg %p42
        $region34: #{tpu_custom_call.1} parent=31 // pred_check_branch
          %177 = sbr.rel (%p175) target = $region36
        $region35: #{tpu_custom_call.1} parent=31 // pred_region
          %179 = dma.done %s171, 128
        $region36: #{tpu_custom_call.1} parent=31 // pred_fallthru
          _
        // Predicated region
        $region37: #{tpu_custom_call.1} parent=31 // pred_check
          %p180 = pneg %p63
        $region38: #{tpu_custom_call.1} parent=31 // pred_check_branch
          %182 = sbr.rel (%p180) target = $region40
        $region39: #{tpu_custom_call.1} parent=31 // pred_region
          %184 = dma.done [#allocation6], 16
        $region40: #{tpu_custom_call.1} parent=31 // pred_fallthru
          _
        %s185 = sand.u32 %s29, 1
        %s186 = scalar_lea.sflag [#allocation3], %s185
        %s187 = sand.u32 %s29, 1
        %s188 = smul.addr %s187, 8
        %s189 = scalar_lea.vmem [#allocation2], %s188
        %p190 = pneg %p42
        %p191 = pneg %p39
        %p192 = pneg %p63
        %p193 = pneg %p60
        %p194 = pneg %p84
        %p195 = pneg %p81
        %p196 = pneg %p110
        %p197 = pneg %p107
        %s198 = sand.u32 %s97, 1
        %s199 = scalar_lea.sflag [#allocation4], %s198
        %s200 = sand.u32 %s97, 1
        %s201 = smul.addr %s200, 8
        %s202 = scalar_lea.vmem [#allocation7], %s201
        %v203 = vld [vmem:[%s174] sm:$0xff]
        %204 = vadd.xlane.f32.xlu0 %v203
        %v205 = vpop.xlane.xlu0 %204
        %v206 = vmul.f32 %v205, 0.0078125
        %v207 = vsub.f32 %v203, %v206
        %v208 = vmul.f32 %v207, %v207
        %209 = vadd.xlane.f32.xlu0 %v208
        %v210 = vpop.xlane.xlu0 %209
        %v211 = vrcp.pop 127.0
        %v212 = vmul.f32 127.0, %v211
        %v213 = vsub.f32 1.0, %v212
        %v214 = vmul.f32 %v211, %v213
        %v215 = vadd.f32 %v211, %v214
        %vm216 = vweird.f32 %v211
        %v217 = vsel %vm216, %v211, %v215
        %v218 = vmul.f32 %v210, %v217
        %v219 = vrsqrt.pop %v218
        %v220 = vmul.f32 %v219, %v218
        %v221 = vmul.f32 %v220, %v219
        %v222 = vmul.f32 0.5, %v221
        %v223 = vsub.f32 1.5, %v222
        %v224 = vmul.f32 %v219, %v223
        %v225 = vmul.f32 %v218, %v224
        %vm226 = vcmp.eq.f32.partialorder %v218, inf
        %v227 = vsel %vm226, %v218, %v225
        %vm228 = vcmp.eq.f32.partialorder %v218, 0.0
        %v229 = vand.u32 %v218, 2147483648
        %v230 = vsel %vm228, %v229, %v227
        %v231 = vadd.f32 %v230, 1e-06
        %v232 = vrcp.pop %v231
        %v233 = vmul.f32 %v231, %v232
        %v234 = vsub.f32 1.0, %v233
        %v235 = vmul.f32 %v232, %v234
        %v236 = vadd.f32 %v232, %v235
        %vm237 = vweird.f32 %v231
        %vm238 = vweird.f32 %v232
        %vm239 = vmor %vm237, %vm238
        %v240 = vsel %vm239, %v232, %v236
        %v241 = vand.u32 2147483647, %v231
        %vm242 = vcmp.eq.f32.partialorder %v241, 8.507059e+37
        %v243 = vand.u32 %v231, 2147483648
        %v244 = vor.u32 1.1754944e-38, %v243
        %v245 = vsel %vm242, %v244, %v240
        %v246 = vmul.f32 1.0, %v245
        %v247 = vld [vmem:[#allocation5] sm:$0x1]
        %v248 = vmul.f32 %v207, %v246
        %v250 = vperm.slane %v247, 0
        %v252 = vmul.f32 %v250, %v248
        %v253 = vld [vmem:[%s2] sm:$0x1]
        %v255 = vperm.slane %v253, 0
        %v257 = vadd.f32 %v252, %v255
        %258 = vst [vmem:[%s202] sm:$0xff] %v257
        %s259 = sand.u32 %s97, 1
        %s260 = scalar_lea.sflag [#allocation4], %s259
        %s261 = sand.u32 %s97, 1
        %s262 = smul.addr %s261, 8
        %s263 = scalar_lea.vmem [#allocation7], %s262
        // Predicated region
        $region41: #{tpu_custom_call.1} parent=31 // pred_check
          %p264 = pneg %p107
        $region42: #{tpu_custom_call.1} parent=31 // pred_check_branch
          %266 = sbr.rel (%p264) target = $region44
        $region43: #{tpu_custom_call.1} parent=31 // pred_region
          %268 = vsyncadd %s260, 0
          %s269 = smul.addr %s21, 8
          %s270 = scalar_lea.hbm %s3, %s269
          %s272 = sshll.u32 %s263, 4
          %s273 = int_to_ptr.vmem [resolvable:$true] %s272
          %s274 = sshll.u32 %s270, 4
          %s275 = int_to_ptr.hbm [resolvable:$true] %s274
          %277 = dma.vmem_to_hbm [thread:$0]  %s273, 128, %s275, %s260
        $region44: #{tpu_custom_call.1} parent=31 // pred_fallthru
          _
      $region32: #{tpu_custom_call.1} parent=5 // pred_fallthru
        _
      %p278 = scmp.le.s32.totalorder 2, %s16
      // Predicated region
      $region45: #{tpu_custom_call.1} parent=5 // pred_check
        %p279 = pneg %p278
      $region46: #{tpu_custom_call.1} parent=5 // pred_check_branch
        %281 = sbr.rel (%p279) target = $region48
      $region47: #{tpu_custom_call.1} parent=5 // pred_region
        %s282 = ssub.s32 %s16, 2
        // Predicated region
        $region49: #{tpu_custom_call.1} parent=47 // pred_check
          %p283 = pneg %p113
        $region50: #{tpu_custom_call.1} parent=47 // pred_check_branch
          %285 = sbr.rel (%p283) target = $region52
        $region51: #{tpu_custom_call.1} parent=47 // pred_region
          %s286 = sand.u32 %s98, 1
          %s287 = scalar_lea.sflag [#allocation4], %s286
          %s288 = sand.u32 %s98, 1
          %s289 = smul.addr %s288, 8
          %s290 = scalar_lea.vmem [#allocation7], %s289
          %292 = dma.done %s287, 128
        $region52: #{tpu_custom_call.1} parent=47 // pred_fallthru
          _
      $region48: #{tpu_custom_call.1} parent=5 // pred_fallthru
        _
    $region6: #{tpu_custom_call.1} parent=1 // loop_footer
      %s20 = sadd.s32 1, %s16
    $region7: #{tpu_custom_call.1} parent=1 // loop_footer_branch
      %15 = sbr.rel target = $region3
    $region8: #{tpu_custom_call.1} parent=1 // loop_exit
      _
    %293 = vsyncpa [#allocation3], 1
    %s294 = scalar_lea.sflag [#allocation3], 1
    %295 = vsyncpa %s294, 1
    %296 = vsyncpa [#allocation6], 1
    %297 = vsyncpa [#allocation4], 1
    %s298 = scalar_lea.sflag [#allocation4], 1
    %299 = vsyncpa %s298, 1

</llo_original>
